<compile_context>
chip_gen: v7x
topology: tpu7x:2x2x1
jax: 0.10.0
libtpu: 0.0.40
codegen_flags: <defaults>
</compile_context>

<pallas_src>
import functools

import jax
import jax.numpy as jnp
from jax.experimental import pallas as pl
from jax.experimental.pallas import tpu as pltpu


def _round_up(x: int, m: int) -> int:
    return (x + m - 1) // m * m


# ---------------------------------------------------------------------------
# Kernel
# ---------------------------------------------------------------------------
def _fused_fc_kernel(x_ref, w_ref, b_ref, cls_ref, reg_ref, *, ccls: int):
    """One fused cls+reg FC on a single MXU pass per N-tile.

    x_ref  : (tn, Dp)   f32  flattened RoI features (one N tile)
    w_ref  : (Dp, Cp)   bf16 packed [w_cls.T | pad | w_reg.T | pad] (resident)
    b_ref  : (1,  Cp)   f32  packed bias (resident)
    cls_ref: (tn, Ccls) f32  cls_score segment (lane-dense store)
    reg_ref: (tn, Creg) f32  bbox_pred segment (lane-dense store)
    """
    # f32 -> bf16 cast runs on the VPU in the MXU's shadow (free slot);
    # accumulate in f32 on the MXU.
    acc = jnp.dot(
        x_ref[...].astype(jnp.bfloat16), w_ref[...],
        preferred_element_type=jnp.float32,
    ) + b_ref[...]
    cls_ref[...] = acc[:, :ccls]        # column split at a 128-lane boundary
    reg_ref[...] = acc[:, ccls:]


# ---------------------------------------------------------------------------
# One-time weight packing (model-load time, outside the per-call hot path)
# ---------------------------------------------------------------------------
def pack_bbox_head_params(w_cls, b_cls, w_reg, b_reg):
    """torch Linear weights are (out, in); transpose to (in, out), place the
    cls and reg segments at separate 128-lane-aligned column offsets, zero-pad
    K to a lane multiple, cast weights to bf16."""
    out_cls, D = w_cls.shape             # num_classes + 1
    out_reg = w_reg.shape[0]             # 4 * num_classes (or 4 if agnostic)
    Dp = _round_up(D, 128)
    Ccls = _round_up(out_cls, 128)       # cls segment padded to its own lanes
    Creg = _round_up(out_reg, 128)       # reg segment starts lane-aligned
    Cp = Ccls + Creg

    w = jnp.zeros((Dp, Cp), jnp.float32)
    w = w.at[:D, :out_cls].set(w_cls.T)
    w = w.at[:D, Ccls:Ccls + out_reg].set(w_reg.T)
    w_packed = w.astype(jnp.bfloat16)

    b = jnp.zeros((1, Cp), jnp.float32)
    b = b.at[0, :out_cls].set(b_cls)
    b = b.at[0, Ccls:Ccls + out_reg].set(b_reg)
    return w_packed, b, out_cls, out_reg, Ccls, Creg


# ---------------------------------------------------------------------------
# Tiling / VMEM planning (static-shape Python, runs at trace time)
# ---------------------------------------------------------------------------
def _tpu_vmem_cap_bytes() -> int:
    """Usable scoped-VMEM cap: physical per-core VMEM minus headroom.
    v5e/v6e (128 MiB) -> ~100 MiB; v7x (64 MiB) -> ~48 MiB."""
    try:
        info = pltpu.get_tpu_info()
        phys = int(getattr(info, "vmem_capacity_bytes", 64 << 20))
    except Exception:  # interpret mode / older runtime: assume v7x worst case
        phys = 64 << 20
    return max(min(phys - (16 << 20), 100 << 20), 16 << 20)


def _pick_tile_n(N: int, max_tile: int) -> int:
    """Tile size along the RoI axis.

    * tiny N: a single tile (8-row f32 granule), no point splitting.
    * otherwise: >= 2 balanced tiles (even count) so the 'parallel' N axis
      shards across both v7x TensorCores and x-tile DMA pipelines against
      compute; 16-row aligned for bf16 sublane packing; capped by VMEM.
    """
    max_tile = max(16, (max_tile // 16) * 16)
    if N <= 32:
        return min(_round_up(N, 8), max_tile)
    n_up = _round_up(N, 16)
    ntiles = max(2, pl.cdiv(n_up, max_tile))
    if ntiles % 2:
        ntiles += 1                       # even tile count -> balanced split
    tn = _round_up(pl.cdiv(n_up, ntiles), 16)
    return min(tn, max_tile)


def _plan_tiles(N: int, Dp: int, Cp: int):
    """Pick (tile_n, vmem_limit_bytes) from the packed shapes and the chip."""
    cap = _tpu_vmem_cap_bytes()
    resident = Dp * Cp * 2 + Cp * 4               # single-buffered bf16 W + f32 bias
    per_row = 2 * Dp * 4 + 2 * Cp * 4             # 2x-buffered f32 x tile + f32 out tiles
    headroom = 2 << 20                            # Mosaic internal scratch / semaphores
    max_tile = (cap - resident - headroom) // per_row
    max_tile = int(max(16, min(512, max_tile)))
    tn = _pick_tile_n(N, max_tile)
    est = resident + per_row * tn + headroom      # no 32 MiB floor: tiny problems stay tiny
    vmem_limit = int(min(max(est, 1 << 20), cap))
    return tn, vmem_limit


# ---------------------------------------------------------------------------
# Forward wrapper
# ---------------------------------------------------------------------------
@functools.partial(
    jax.jit, static_argnames=("out_cls", "out_reg", "ccls_p", "creg_p"))
def bbox_head_forward(x, w_packed, b_packed, *, out_cls, out_reg, ccls_p, creg_p):
    """x: (N, C, H, W) float32 RoI features.
    Returns (cls_score (N, num_classes+1), bbox_pred (N, 4*num_classes))."""
    N = x.shape[0]
    D = x.shape[1] * x.shape[2] * x.shape[3]
    Dp, Cp = w_packed.shape
    assert Cp == ccls_p + creg_p

    x_flat = x.reshape(N, D)             # same ordering as torch .view(N, -1)
    # K pad only when D is not lane-aligned (zero columns match the zero rows
    # padded into the weights, so the matmul result is unchanged).
    if Dp != D:
        x_flat = jnp.pad(x_flat, ((0, 0), (0, Dp - D)))
    # No N pad and no bf16 pre-cast pass over x: the grid uses cdiv / partial
    # last block (rows past N are masked at write-back and sliced off), and
    # the f32->bf16 cast happens inside the kernel.

    tn, vmem_limit = _plan_tiles(N, Dp, Cp)
    grid = (pl.cdiv(N, tn),)

    kernel = functools.partial(_fused_fc_kernel, ccls=ccls_p)

    cls_pad, reg_pad = pl.pallas_call(
        kernel,
        out_shape=(
            jax.ShapeDtypeStruct((N, ccls_p), jnp.float32),
            jax.ShapeDtypeStruct((N, creg_p), jnp.float32),
        ),
        grid_spec=pltpu.PrefetchScalarGridSpec(
            num_scalar_prefetch=0,
            grid=grid,
            in_specs=[
                # x tile: pipelined / double-buffered along the N grid axis.
                pl.BlockSpec((tn, Dp), lambda i: (i, 0)),
                # packed weights + bias: constant index_map => VMEM-resident;
                # Buffered(1) drops the pointless second buffer (halves the
                # weight VMEM footprint — matters on v7x's 64 MiB).
                pl.BlockSpec((Dp, Cp), lambda i: (0, 0),
                             pipeline_mode=pl.Buffered(1)),
                pl.BlockSpec((1, Cp), lambda i: (0, 0),
                             pipeline_mode=pl.Buffered(1)),
            ],
            out_specs=[
                pl.BlockSpec((tn, ccls_p), lambda i: (i, 0)),
                pl.BlockSpec((tn, creg_p), lambda i: (i, 0)),
            ],
        ),
        compiler_params=pltpu.CompilerParams(
            dimension_semantics=("parallel",),
            vmem_limit_bytes=vmem_limit,
        ),
    )(x_flat, w_packed, b_packed)

    # Segment starts are lane-aligned (column 0 of each output); only the
    # trailing pad columns are trimmed here.
    cls_score = cls_pad[:, :out_cls]
    bbox_pred = reg_pad[:, :out_reg]
    return cls_score, bbox_pred


# ---------------------------------------------------------------------------
# Demo / self-check
# ---------------------------------------------------------------------------
if __name__ == "__main__":
    # Small deterministic config consistent with BBoxHead defaults
    # (with_avg_pool=False, roi_feat_size=7, reg_class_agnostic=False).
    num_rois = 8
    in_channels = 4
    roi_feat_size = 7
    num_classes = 80

    feat_dim = in_channels * roi_feat_size * roi_feat_size      # 196
    n_cls = num_classes + 1                                      # 81
    n_reg = 4 * num_classes                                      # 320

    key = jax.random.PRNGKey(0)
    k_x, k_wc, k_wr = jax.random.split(key, 3)

    # RoI features, NCHW layout like the PyTorch module input.
    x = jax.random.normal(
        k_x, (num_rois, in_channels, roi_feat_size, roi_feat_size), jnp.float32)

    # init_weights(): normal(0, 0.01) for fc_cls, normal(0, 0.001) for fc_reg,
    # zero biases. torch Linear weight layout is (out_features, in_features).
    w_cls = 0.01 * jax.random.normal(k_wc, (n_cls, feat_dim), jnp.float32)
    b_cls = jnp.zeros((n_cls,), jnp.float32)
    w_reg = 0.001 * jax.random.normal(k_wr, (n_reg, feat_dim), jnp.float32)
    b_reg = jnp.zeros((n_reg,), jnp.float32)

    # One-time weight packing (model-load time).
    w_packed, b_packed, oc, orr, ccls_p, creg_p = pack_bbox_head_params(
        w_cls, b_cls, w_reg, b_reg)

    cls_score, bbox_pred = bbox_head_forward(
        x, w_packed, b_packed, out_cls=oc, out_reg=orr,
        ccls_p=ccls_p, creg_p=creg_p)
    jax.block_until_ready((cls_score, bbox_pred))

    # Plain-JAX reference of the same bf16-weight / bf16-activation forward
    # with f32 accumulation (matches the MXU path).
    x_flat = x.reshape(num_rois, feat_dim)
    xb = x_flat.astype(jnp.bfloat16).astype(jnp.float32)
    wcb = w_cls.astype(jnp.bfloat16).astype(jnp.float32)
    wrb = w_reg.astype(jnp.bfloat16).astype(jnp.float32)
    ref_cls = jnp.dot(xb, wcb.T, precision=jax.lax.Precision.HIGHEST) + b_cls
    ref_reg = jnp.dot(xb, wrb.T, precision=jax.lax.Precision.HIGHEST) + b_reg

    assert cls_score.shape == (num_rois, n_cls), cls_score.shape
    assert bbox_pred.shape == (num_rois, n_reg), bbox_pred.shape
    assert jnp.allclose(cls_score, ref_cls, atol=2e-3, rtol=2e-3)
    assert jnp.allclose(bbox_pred, ref_reg, atol=2e-3, rtol=2e-3)

    print("KERNEL_OK")
</pallas_src>

<mosaic_0001>
module attributes {stable_mosaic.version = 11 : i64} {
  func.func @_fused_fc_kernel(%arg0: i32, %arg1: memref<8x256xf32, #tpu.memory_space<vmem>>, %arg2: memref<256x512xbf16, #tpu.memory_space<vmem>>, %arg3: memref<1x512xf32, #tpu.memory_space<vmem>>, %arg4: memref<8x128xf32, #tpu.memory_space<vmem>>, %arg5: memref<8x384xf32, #tpu.memory_space<vmem>>) attributes {dimension_semantics = [#tpu.dimension_semantics<parallel>], iteration_bounds = array<i64: 1>, scalar_prefetch = 0 : i64, scratch_operands = 0 : i64, tpu.core_type = #tpu.core_type<tc>, window_params = [{transform_indices = @transform_0, window_bounds = array<i64: 8, 256>}, {pipeline_mode = #tpu.pipeline_mode<synchronous>, transform_indices = @transform_1, window_bounds = array<i64: 256, 512>}, {pipeline_mode = #tpu.pipeline_mode<synchronous>, transform_indices = @transform_2, window_bounds = array<i64: 1, 512>}, {transform_indices = @transform_3, window_bounds = array<i64: 8, 128>}, {transform_indices = @transform_4, window_bounds = array<i64: 8, 384>}]} {
    %c0 = arith.constant 0 : index
    %c0_0 = arith.constant 0 : index
    %0 = vector.load %arg1[%c0, %c0_0] : memref<8x256xf32, #tpu.memory_space<vmem>>, vector<8x256xf32>
    %1 = arith.truncf %0 : vector<8x256xf32> to vector<8x256xbf16>
    %c0_1 = arith.constant 0 : index
    %c0_2 = arith.constant 0 : index
    %2 = vector.load %arg2[%c0_1, %c0_2] : memref<256x512xbf16, #tpu.memory_space<vmem>>, vector<256x512xbf16>
    %cst = arith.constant dense<0.000000e+00> : vector<8x512xf32>
    %3 = tpu.matmul %1, %2, %cst {dimension_numbers = #tpu.dot_dimension_numbers<[1], [0], [0], [1], [0, 0, 1, 1], [], []>} : vector<8x256xbf16>, vector<256x512xbf16>, vector<8x512xf32> -> vector<8x512xf32>
    %c0_3 = arith.constant 0 : index
    %c0_4 = arith.constant 0 : index
    %4 = vector.load %arg3[%c0_3, %c0_4] : memref<1x512xf32, #tpu.memory_space<vmem>>, vector<1x512xf32>
    %5 = vector.broadcast %4 : vector<1x512xf32> to vector<8x512xf32>
    %6 = arith.addf %3, %5 : vector<8x512xf32>
    %7 = vector.extract_strided_slice %6 {offsets = [0, 0], sizes = [8, 128], strides = [1, 1]} : vector<8x512xf32> to vector<8x128xf32>
    %c0_5 = arith.constant 0 : index
    %c0_6 = arith.constant 0 : index
    %8 = vector.load %arg4[%c0_5, %c0_6] : memref<8x128xf32, #tpu.memory_space<vmem>>, vector<8x128xf32>
    tpu.vector_store %arg4[%c0_5, %c0_6], %7 {strides = array<i32>} : memref<8x128xf32, #tpu.memory_space<vmem>>, vector<8x128xf32>,
    %9 = vector.extract_strided_slice %6 {offsets = [0, 128], sizes = [8, 384], strides = [1, 1]} : vector<8x512xf32> to vector<8x384xf32>
    %c0_7 = arith.constant 0 : index
    %c0_8 = arith.constant 0 : index
    %10 = vector.load %arg5[%c0_7, %c0_8] : memref<8x384xf32, #tpu.memory_space<vmem>>, vector<8x384xf32>
    tpu.vector_store %arg5[%c0_7, %c0_8], %9 {strides = array<i32>} : memref<8x384xf32, #tpu.memory_space<vmem>>, vector<8x384xf32>,
    return
  }
  func.func @transform_0(%arg0: i32) -> (i32, i32) {
    %c0_i32 = arith.constant 0 : i32
    %c0_i32_0 = arith.constant 0 : i32
    return %arg0, %c0_i32 : i32, i32
  }
  func.func @transform_1(%arg0: i32) -> (i32, i32) {
    %c0_i32 = arith.constant 0 : i32
    %c0_i32_0 = arith.constant 0 : i32
    %c0_i32_1 = arith.constant 0 : i32
    return %c0_i32, %c0_i32_0 : i32, i32
  }
  func.func @transform_2(%arg0: i32) -> (i32, i32) {
    %c0_i32 = arith.constant 0 : i32
    %c0_i32_0 = arith.constant 0 : i32
    %c0_i32_1 = arith.constant 0 : i32
    return %c0_i32, %c0_i32_0 : i32, i32
  }
  func.func @transform_3(%arg0: i32) -> (i32, i32) {
    %c0_i32 = arith.constant 0 : i32
    %c0_i32_0 = arith.constant 0 : i32
    return %arg0, %c0_i32 : i32, i32
  }
  func.func @transform_4(%arg0: i32) -> (i32, i32) {
    %c0_i32 = arith.constant 0 : i32
    %c0_i32_0 = arith.constant 0 : i32
    return %arg0, %c0_i32 : i32, i32
  }
}

</mosaic_0001>

<llo_original>
// kernel: bbox_head_forward.1
$region0: #{bbox_head_forward.1}
  #allocation0 [shape = 'u32[]', space=smem, size = 0x4, offset = 0x4, fixed_abs, tag = 'smem constant byte address 0x4 - core index']
  #allocation1 [shape = 'u32[144,128]{1,0:T(1,128)}', space=vmem, size = 0x12000, scoped, tag = 'internal scratch']
  %s0 = inlined_call_operand.vmem [shape: f32[8,256], index: 0, kind: input, shape index: {}]
  %s1 = inlined_call_operand.vmem [shape: bf16[256,512], index: 1, kind: input, shape index: {}]
  %s2 = inlined_call_operand.vmem [shape: f32[1,512], index: 2, kind: input, shape index: {}]
  %s3 = inlined_call_operand.hbm [shape: f32[8,128], index: 3, kind: output, shape index: {0}]
  %s4 = inlined_call_operand.hbm [shape: f32[8,384], index: 4, kind: output, shape index: {1}]
  %5 = xla_tuple %s3, %s4
  %s6 = sld [smem:[#allocation0]]
  $region30: #{bbox_head_forward.1} parent=0
    _
  %s8 = ssub.s32 1, %s6
  %s9 = scalar_select 0, %s8, %s6
  $region1: #{bbox_head_forward.1} parent=0
    #allocation2 [shape = 'u8[4096]{0}', space=vmem, size = 0x1000, scoped, tag = 'output window, operand 0, single buffered']
    #allocation3 [shape = 's32[1]{0}', space=sflag, size = 0x4, scoped, tag = 'scoped memory for bbox_head_forward.1']
    #allocation4 [shape = 'u8[12288]{0}', space=vmem, size = 0x3000, scoped, tag = 'output window, operand 1, single buffered']
    #allocation5 [shape = 's32[1]{0}', space=sflag, size = 0x4, scoped, tag = 'scoped memory for bbox_head_forward.1']
    %10 = vsyncpa [#allocation3], 0
    %11 = vsyncpa [#allocation5], 0
    // Predicated region
    $region2: #{bbox_head_forward.1} parent=1 // pred_check
      _
    $region3: #{bbox_head_forward.1} parent=1 // pred_check_branch
      %13 = sbr.rel (0) target = $region5
    $region4: #{bbox_head_forward.1} parent=1 // pred_region
      _
    $region5: #{bbox_head_forward.1} parent=1 // pred_fallthru
      _
    // Predicated region
    $region6: #{bbox_head_forward.1} parent=1 // pred_check
      _
    $region7: #{bbox_head_forward.1} parent=1 // pred_check_branch
      %15 = sbr.rel (0) target = $region9
    $region8: #{bbox_head_forward.1} parent=1 // pred_region
      _
    $region9: #{bbox_head_forward.1} parent=1 // pred_fallthru
      _
    // Predicated region
    $region10: #{bbox_head_forward.1} parent=1 // pred_check
      _
    $region11: #{bbox_head_forward.1} parent=1 // pred_check_branch
      %17 = sbr.rel (0) target = $region13
    $region12: #{bbox_head_forward.1} parent=1 // pred_region
      _
    $region13: #{bbox_head_forward.1} parent=1 // pred_fallthru
      _
    %v18 = vld [vmem:[%s0] sm:$0xff]
    %v19 = vld [vmem:[%s0 + $0x8] sm:$0xff]
    %v20 = vpack.c.bf16 %v18, %v18
    %v21 = vpack.c.bf16 %v19, %v19
    %v22 = vld [vmem:[%s1] sm:$0xff]
    %v23 = vld [vmem:[%s1 + $0x8] sm:$0xff]
    %v24 = vld [vmem:[%s1 + $0x10] sm:$0xff]
    %v25 = vld [vmem:[%s1 + $0x18] sm:$0xff]
    %v26 = vld [vmem:[%s1 + $0x20] sm:$0xff]
    %v27 = vld [vmem:[%s1 + $0x28] sm:$0xff]
    %v28 = vld [vmem:[%s1 + $0x30] sm:$0xff]
    %v29 = vld [vmem:[%s1 + $0x38] sm:$0xff]
    %v30 = vld [vmem:[%s1 + $0x40] sm:$0xff]
    %v31 = vld [vmem:[%s1 + $0x48] sm:$0xff]
    %v32 = vld [vmem:[%s1 + $0x50] sm:$0xff]
    %v33 = vld [vmem:[%s1 + $0x58] sm:$0xff]
    %v34 = vld [vmem:[%s1 + $0x60] sm:$0xff]
    %v35 = vld [vmem:[%s1 + $0x68] sm:$0xff]
    %v36 = vld [vmem:[%s1 + $0x70] sm:$0xff]
    %v37 = vld [vmem:[%s1 + $0x78] sm:$0xff]
    %v38 = vld [vmem:[%s1 + $0x80] sm:$0xff]
    %v39 = vld [vmem:[%s1 + $0x88] sm:$0xff]
    %v40 = vld [vmem:[%s1 + $0x90] sm:$0xff]
    %v41 = vld [vmem:[%s1 + $0x98] sm:$0xff]
    %v42 = vld [vmem:[%s1 + $0xa0] sm:$0xff]
    %v43 = vld [vmem:[%s1 + $0xa8] sm:$0xff]
    %v44 = vld [vmem:[%s1 + $0xb0] sm:$0xff]
    %v45 = vld [vmem:[%s1 + $0xb8] sm:$0xff]
    %v46 = vld [vmem:[%s1 + $0xc0] sm:$0xff]
    %v47 = vld [vmem:[%s1 + $0xc8] sm:$0xff]
    %v48 = vld [vmem:[%s1 + $0xd0] sm:$0xff]
    %v49 = vld [vmem:[%s1 + $0xd8] sm:$0xff]
    %v50 = vld [vmem:[%s1 + $0xe0] sm:$0xff]
    %v51 = vld [vmem:[%s1 + $0xe8] sm:$0xff]
    %v52 = vld [vmem:[%s1 + $0xf0] sm:$0xff]
    %v53 = vld [vmem:[%s1 + $0xf8] sm:$0xff]
    %v54 = vld [vmem:[%s1 + $0x100] sm:$0xff]
    %v55 = vld [vmem:[%s1 + $0x108] sm:$0xff]
    %v56 = vld [vmem:[%s1 + $0x110] sm:$0xff]
    %v57 = vld [vmem:[%s1 + $0x118] sm:$0xff]
    %v58 = vld [vmem:[%s1 + $0x120] sm:$0xff]
    %v59 = vld [vmem:[%s1 + $0x128] sm:$0xff]
    %v60 = vld [vmem:[%s1 + $0x130] sm:$0xff]
    %v61 = vld [vmem:[%s1 + $0x138] sm:$0xff]
    %v62 = vld [vmem:[%s1 + $0x140] sm:$0xff]
    %v63 = vld [vmem:[%s1 + $0x148] sm:$0xff]
    %v64 = vld [vmem:[%s1 + $0x150] sm:$0xff]
    %v65 = vld [vmem:[%s1 + $0x158] sm:$0xff]
    %v66 = vld [vmem:[%s1 + $0x160] sm:$0xff]
    %v67 = vld [vmem:[%s1 + $0x168] sm:$0xff]
    %v68 = vld [vmem:[%s1 + $0x170] sm:$0xff]
    %v69 = vld [vmem:[%s1 + $0x178] sm:$0xff]
    %v70 = vld [vmem:[%s1 + $0x180] sm:$0xff]
    %v71 = vld [vmem:[%s1 + $0x188] sm:$0xff]
    %v72 = vld [vmem:[%s1 + $0x190] sm:$0xff]
    %v73 = vld [vmem:[%s1 + $0x198] sm:$0xff]
    %v74 = vld [vmem:[%s1 + $0x1a0] sm:$0xff]
    %v75 = vld [vmem:[%s1 + $0x1a8] sm:$0xff]
    %v76 = vld [vmem:[%s1 + $0x1b0] sm:$0xff]
    %v77 = vld [vmem:[%s1 + $0x1b8] sm:$0xff]
    %v78 = vld [vmem:[%s1 + $0x1c0] sm:$0xff]
    %v79 = vld [vmem:[%s1 + $0x1c8] sm:$0xff]
    %v80 = vld [vmem:[%s1 + $0x1d0] sm:$0xff]
    %v81 = vld [vmem:[%s1 + $0x1d8] sm:$0xff]
    %v82 = vld [vmem:[%s1 + $0x1e0] sm:$0xff]
    %v83 = vld [vmem:[%s1 + $0x1e8] sm:$0xff]
    %v84 = vld [vmem:[%s1 + $0x1f0] sm:$0xff]
    %v85 = vld [vmem:[%s1 + $0x1f8] sm:$0xff]
    %v86 = vld [vmem:[%s2] sm:$0xf]
    %v88 = vlaneseq
    %v89 = vshrl.u32 %v88, 7
    %v90 = vsub.s32 0, %v89
    %v91 = vrot.slane %v86, %v90
    %v92 = vlaneseq
    %v93 = vshrl.u32 %v92, 7
    %v94 = vsub.s32 1, %v93
    %v95 = vrot.slane %v86, %v94
    %v96 = vlaneseq
    %v97 = vshrl.u32 %v96, 7
    %v98 = vsub.s32 2, %v97
    %v99 = vrot.slane %v86, %v98
    %v100 = vlaneseq
    %v101 = vshrl.u32 %v100, 7
    %v102 = vsub.s32 3, %v101
    %v103 = vrot.slane %v86, %v102
    %v172 = vunpack.c.l.b16 %v22
    %v173 = vunpack.c.h.b16 %v22
    %v174 = vunpack.c.l.b16 %v23
    %v175 = vunpack.c.h.b16 %v23
    %v176 = vunpack.c.l.b16 %v24
    %v177 = vunpack.c.h.b16 %v24
    %v178 = vunpack.c.l.b16 %v25
    %v179 = vunpack.c.h.b16 %v25
    %v180 = vunpack.c.l.b16 %v26
    %v181 = vunpack.c.h.b16 %v26
    %v182 = vunpack.c.l.b16 %v27
    %v183 = vunpack.c.h.b16 %v27
    %v184 = vunpack.c.l.b16 %v28
    %v185 = vunpack.c.h.b16 %v28
    %v186 = vunpack.c.l.b16 %v29
    %v187 = vunpack.c.h.b16 %v29
    %v188 = vunpack.c.l.b16 %v30
    %v189 = vunpack.c.h.b16 %v30
    %v190 = vunpack.c.l.b16 %v31
    %v191 = vunpack.c.h.b16 %v31
    %v192 = vunpack.c.l.b16 %v32
    %v193 = vunpack.c.h.b16 %v32
    %v194 = vunpack.c.l.b16 %v33
    %v195 = vunpack.c.h.b16 %v33
    %v196 = vunpack.c.l.b16 %v34
    %v197 = vunpack.c.h.b16 %v34
    %v198 = vunpack.c.l.b16 %v35
    %v199 = vunpack.c.h.b16 %v35
    %v200 = vunpack.c.l.b16 %v36
    %v201 = vunpack.c.h.b16 %v36
    %v202 = vunpack.c.l.b16 %v37
    %v203 = vunpack.c.h.b16 %v37
    %v204 = vunpack.c.l.b16 %v38
    %v205 = vunpack.c.h.b16 %v38
    %v206 = vunpack.c.l.b16 %v39
    %v207 = vunpack.c.h.b16 %v39
    %v208 = vunpack.c.l.b16 %v40
    %v209 = vunpack.c.h.b16 %v40
    %v210 = vunpack.c.l.b16 %v41
    %v211 = vunpack.c.h.b16 %v41
    %v212 = vunpack.c.l.b16 %v42
    %v213 = vunpack.c.h.b16 %v42
    %v214 = vunpack.c.l.b16 %v43
    %v215 = vunpack.c.h.b16 %v43
    %v216 = vunpack.c.l.b16 %v44
    %v217 = vunpack.c.h.b16 %v44
    %v218 = vunpack.c.l.b16 %v45
    %v219 = vunpack.c.h.b16 %v45
    %v220 = vunpack.c.l.b16 %v46
    %v221 = vunpack.c.h.b16 %v46
    %v222 = vunpack.c.l.b16 %v47
    %v223 = vunpack.c.h.b16 %v47
    %v224 = vunpack.c.l.b16 %v48
    %v225 = vunpack.c.h.b16 %v48
    %v226 = vunpack.c.l.b16 %v49
    %v227 = vunpack.c.h.b16 %v49
    %v228 = vunpack.c.l.b16 %v50
    %v229 = vunpack.c.h.b16 %v50
    %v230 = vunpack.c.l.b16 %v51
    %v231 = vunpack.c.h.b16 %v51
    %v232 = vunpack.c.l.b16 %v52
    %v233 = vunpack.c.h.b16 %v52
    %v234 = vunpack.c.l.b16 %v53
    %v235 = vunpack.c.h.b16 %v53
    %v236 = vunpack.c.l.b16 %v54
    %v237 = vunpack.c.h.b16 %v54
    %v238 = vunpack.c.l.b16 %v55
    %v239 = vunpack.c.h.b16 %v55
    %v240 = vunpack.c.l.b16 %v56
    %v241 = vunpack.c.h.b16 %v56
    %v242 = vunpack.c.l.b16 %v57
    %v243 = vunpack.c.h.b16 %v57
    %v244 = vunpack.c.l.b16 %v58
    %v245 = vunpack.c.h.b16 %v58
    %v246 = vunpack.c.l.b16 %v59
    %v247 = vunpack.c.h.b16 %v59
    %v248 = vunpack.c.l.b16 %v60
    %v249 = vunpack.c.h.b16 %v60
    %v250 = vunpack.c.l.b16 %v61
    %v251 = vunpack.c.h.b16 %v61
    %v252 = vunpack.c.l.b16 %v62
    %v253 = vunpack.c.h.b16 %v62
    %v254 = vunpack.c.l.b16 %v63
    %v255 = vunpack.c.h.b16 %v63
    %v256 = vunpack.c.l.b16 %v64
    %v257 = vunpack.c.h.b16 %v64
    %v258 = vunpack.c.l.b16 %v65
    %v259 = vunpack.c.h.b16 %v65
    %v260 = vunpack.c.l.b16 %v66
    %v261 = vunpack.c.h.b16 %v66
    %v262 = vunpack.c.l.b16 %v67
    %v263 = vunpack.c.h.b16 %v67
    %v264 = vunpack.c.l.b16 %v68
    %v265 = vunpack.c.h.b16 %v68
    %v266 = vunpack.c.l.b16 %v69
    %v267 = vunpack.c.h.b16 %v69
    %v268 = vunpack.c.l.b16 %v70
    %v269 = vunpack.c.h.b16 %v70
    %v270 = vunpack.c.l.b16 %v71
    %v271 = vunpack.c.h.b16 %v71
    %v272 = vunpack.c.l.b16 %v72
    %v273 = vunpack.c.h.b16 %v72
    %v274 = vunpack.c.l.b16 %v73
    %v275 = vunpack.c.h.b16 %v73
    %v276 = vunpack.c.l.b16 %v74
    %v277 = vunpack.c.h.b16 %v74
    %v278 = vunpack.c.l.b16 %v75
    %v279 = vunpack.c.h.b16 %v75
    %v280 = vunpack.c.l.b16 %v76
    %v281 = vunpack.c.h.b16 %v76
    %v282 = vunpack.c.l.b16 %v77
    %v283 = vunpack.c.h.b16 %v77
    %v284 = vunpack.c.l.b16 %v78
    %v285 = vunpack.c.h.b16 %v78
    %v286 = vunpack.c.l.b16 %v79
    %v287 = vunpack.c.h.b16 %v79
    %v288 = vunpack.c.l.b16 %v80
    %v289 = vunpack.c.h.b16 %v80
    %v290 = vunpack.c.l.b16 %v81
    %v291 = vunpack.c.h.b16 %v81
    %v292 = vunpack.c.l.b16 %v82
    %v293 = vunpack.c.h.b16 %v82
    %v294 = vunpack.c.l.b16 %v83
    %v295 = vunpack.c.h.b16 %v83
    %v296 = vunpack.c.l.b16 %v84
    %v297 = vunpack.c.h.b16 %v84
    %v298 = vunpack.c.l.b16 %v85
    %v299 = vunpack.c.h.b16 %v85
    %v300 = vpack.c.b16 %v176, %v172
    %v301 = vpack.c.b16 %v177, %v173
    %v302 = vpack.c.b16 %v178, %v174
    %v303 = vpack.c.b16 %v179, %v175
    %v304 = vpack.c.b16 %v184, %v180
    %v305 = vpack.c.b16 %v185, %v181
    %v306 = vpack.c.b16 %v186, %v182
    %v307 = vpack.c.b16 %v187, %v183
    %v308 = vpack.c.b16 %v192, %v188
    %v309 = vpack.c.b16 %v193, %v189
    %v310 = vpack.c.b16 %v194, %v190
    %v311 = vpack.c.b16 %v195, %v191
    %v312 = vpack.c.b16 %v200, %v196
    %v313 = vpack.c.b16 %v201, %v197
    %v314 = vpack.c.b16 %v202, %v198
    %v315 = vpack.c.b16 %v203, %v199
    %v316 = vpack.c.b16 %v208, %v204
    %v317 = vpack.c.b16 %v209, %v205
    %v318 = vpack.c.b16 %v210, %v206
    %v319 = vpack.c.b16 %v211, %v207
    %v320 = vpack.c.b16 %v216, %v212
    %v321 = vpack.c.b16 %v217, %v213
    %v322 = vpack.c.b16 %v218, %v214
    %v323 = vpack.c.b16 %v219, %v215
    %v324 = vpack.c.b16 %v224, %v220
    %v325 = vpack.c.b16 %v225, %v221
    %v326 = vpack.c.b16 %v226, %v222
    %v327 = vpack.c.b16 %v227, %v223
    %v328 = vpack.c.b16 %v232, %v228
    %v329 = vpack.c.b16 %v233, %v229
    %v330 = vpack.c.b16 %v234, %v230
    %v331 = vpack.c.b16 %v235, %v231
    %v332 = vpack.c.b16 %v240, %v236
    %v333 = vpack.c.b16 %v241, %v237
    %v334 = vpack.c.b16 %v242, %v238
    %v335 = vpack.c.b16 %v243, %v239
    %v336 = vpack.c.b16 %v248, %v244
    %v337 = vpack.c.b16 %v249, %v245
    %v338 = vpack.c.b16 %v250, %v246
    %v339 = vpack.c.b16 %v251, %v247
    %v340 = vpack.c.b16 %v256, %v252
    %v341 = vpack.c.b16 %v257, %v253
    %v342 = vpack.c.b16 %v258, %v254
    %v343 = vpack.c.b16 %v259, %v255
    %v344 = vpack.c.b16 %v264, %v260
    %v345 = vpack.c.b16 %v265, %v261
    %v346 = vpack.c.b16 %v266, %v262
    %v347 = vpack.c.b16 %v267, %v263
    %v348 = vpack.c.b16 %v272, %v268
    %v349 = vpack.c.b16 %v273, %v269
    %v350 = vpack.c.b16 %v274, %v270
    %v351 = vpack.c.b16 %v275, %v271
    %v352 = vpack.c.b16 %v280, %v276
    %v353 = vpack.c.b16 %v281, %v277
    %v354 = vpack.c.b16 %v282, %v278
    %v355 = vpack.c.b16 %v283, %v279
    %v356 = vpack.c.b16 %v288, %v284
    %v357 = vpack.c.b16 %v289, %v285
    %v358 = vpack.c.b16 %v290, %v286
    %v359 = vpack.c.b16 %v291, %v287
    %v360 = vpack.c.b16 %v296, %v292
    %v361 = vpack.c.b16 %v297, %v293
    %v362 = vpack.c.b16 %v298, %v294
    %v363 = vpack.c.b16 %v299, %v295
    %428 = vmatprep.subr.bf16.mxu0 %v301
    %429 = vmatpush1.bf16.msra.mxu0 %v300
    %430 = vmatprep.subr.bf16.mxu0 %v305
    %431 = vmatpush1.bf16.msra.mxu0 %v304
    %432 = vmatprep.subr.bf16.mxu0 %v309
    %433 = vmatpush1.bf16.msra.mxu0 %v308
    %434 = vmatprep.subr.bf16.mxu0 %v313
    %435 = vmatpush1.bf16.msra.mxu0 %v312
    %436 = vmatprep.subr.bf16.mxu0 %v317
    %437 = vmatpush1.bf16.msra.mxu0 %v316
    %438 = vmatprep.subr.bf16.mxu0 %v321
    %439 = vmatpush1.bf16.msra.mxu0 %v320
    %440 = vmatprep.subr.bf16.mxu0 %v325
    %441 = vmatpush1.bf16.msra.mxu0 %v324
    %442 = vmatprep.subr.bf16.mxu0 %v329
    %443 = vmatpush1.bf16.msra.mxu0 %v328
    %444 = vmatprep.subr.bf16.mxu0 %v333
    %445 = vmatpush1.bf16.msra.mxu0 %v332
    %446 = vmatprep.subr.bf16.mxu0 %v337
    %447 = vmatpush1.bf16.msra.mxu0 %v336
    %448 = vmatprep.subr.bf16.mxu0 %v341
    %449 = vmatpush1.bf16.msra.mxu0 %v340
    %450 = vmatprep.subr.bf16.mxu0 %v345
    %451 = vmatpush1.bf16.msra.mxu0 %v344
    %452 = vmatprep.subr.bf16.mxu0 %v349
    %453 = vmatpush1.bf16.msra.mxu0 %v348
    %454 = vmatprep.subr.bf16.mxu0 %v353
    %455 = vmatpush1.bf16.msra.mxu0 %v352
    %456 = vmatprep.subr.bf16.mxu0 %v357
    %457 = vmatpush1.bf16.msra.mxu0 %v356
    %458 = vmatprep.subr.bf16.mxu0 %v361
    %459 = vmatpush1.bf16.msra.mxu0 %v360
    %460 = vmatprep.mubr.bf16.mxu0 %v21
    %461 = vmatmul.mubr.bf16.gmra.mrb[0].mxu0 %v20
    %v462 = vpop.f32.mrb[0].mxu0
    %v463 = vadd.f32 %v91, %v462
    %v464 = vpop.f32.mrb[0].mxu0
    %v465 = vadd.f32 %v95, %v464
    %v466 = vpop.f32.mrb[0].mxu0
    %v467 = vpop.f32.mrb[0].mxu0
    %468 = vdwg.mxu0
    %469 = vmatprep.subr.bf16.mxu0 %v303
    %470 = vmatpush1.bf16.msra.mxu0 %v302
    %471 = vmatprep.subr.bf16.mxu0 %v307
    %472 = vmatpush1.bf16.msra.mxu0 %v306
    %473 = vmatprep.subr.bf16.mxu0 %v311
    %474 = vmatpush1.bf16.msra.mxu0 %v310
    %475 = vmatprep.subr.bf16.mxu0 %v315
    %476 = vmatpush1.bf16.msra.mxu0 %v314
    %477 = vmatprep.subr.bf16.mxu0 %v319
    %478 = vmatpush1.bf16.msra.mxu0 %v318
    %479 = vmatprep.subr.bf16.mxu0 %v323
    %480 = vmatpush1.bf16.msra.mxu0 %v322
    %481 = vmatprep.subr.bf16.mxu0 %v327
    %482 = vmatpush1.bf16.msra.mxu0 %v326
    %483 = vmatprep.subr.bf16.mxu0 %v331
    %484 = vmatpush1.bf16.msra.mxu0 %v330
    %485 = vmatprep.subr.bf16.mxu0 %v335
    %486 = vmatpush1.bf16.msra.mxu0 %v334
    %487 = vmatprep.subr.bf16.mxu0 %v339
    %488 = vmatpush1.bf16.msra.mxu0 %v338
    %489 = vmatprep.subr.bf16.mxu0 %v343
    %490 = vmatpush1.bf16.msra.mxu0 %v342
    %491 = vmatprep.subr.bf16.mxu0 %v347
    %492 = vmatpush1.bf16.msra.mxu0 %v346
    %493 = vmatprep.subr.bf16.mxu0 %v351
    %494 = vmatpush1.bf16.msra.mxu0 %v350
    %495 = vmatprep.subr.bf16.mxu0 %v355
    %496 = vmatpush1.bf16.msra.mxu0 %v354
    %497 = vmatprep.subr.bf16.mxu0 %v359
    %498 = vmatpush1.bf16.msra.mxu0 %v358
    %499 = vmatprep.subr.bf16.mxu0 %v363
    %500 = vmatpush1.bf16.msra.mxu0 %v362
    %501 = vmatprep.mubr.bf16.mxu0 %v21
    %502 = vmatmul.mubr.bf16.gmra.mrb[0].mxu0 %v20
    %v503 = vpop.f32.mrb[0].mxu0
    %v504 = vadd.f32 %v99, %v503
    %v505 = vpop.f32.mrb[0].mxu0
    %v506 = vadd.f32 %v103, %v505
    %v507 = vpop.f32.mrb[0].mxu0
    %v508 = vpop.f32.mrb[0].mxu0
    %509 = vdwg.mxu0
    %510 = vst [vmem:[#allocation2] sm:$0xff] %v463
    %511 = vst [vmem:[#allocation4] sm:$0xff] %v465
    %512 = vst [vmem:[#allocation4 + $0x8] sm:$0xff] %v504
    %513 = vst [vmem:[#allocation4 + $0x10] sm:$0xff] %v506
    // Predicated region
    $region14: #{bbox_head_forward.1} parent=1 // pred_check
      _
    $region15: #{bbox_head_forward.1} parent=1 // pred_check_branch
      %515 = sbr.rel (0) target = $region17
    $region16: #{bbox_head_forward.1} parent=1 // pred_region
      %s517 = ssub.s32 128, 128
      %518 = vsyncadd [#allocation3], %s517
      %s520 = sshll.u32 [#allocation2], 4
      %s521 = int_to_ptr.vmem [resolvable:$true] %s520
      %523 = dma.vmem_to_hbm [thread:$0]  %s521, 128, %s3, [#allocation3]
    $region17: #{bbox_head_forward.1} parent=1 // pred_fallthru
      _
    // Predicated region
    $region18: #{bbox_head_forward.1} parent=1 // pred_check
      _
    $region19: #{bbox_head_forward.1} parent=1 // pred_check_branch
      %525 = sbr.rel (0) target = $region21
    $region20: #{bbox_head_forward.1} parent=1 // pred_region
      %s527 = ssub.s32 384, 384
      %528 = vsyncadd [#allocation5], %s527
      %s530 = sshll.u32 [#allocation4], 4
      %s531 = int_to_ptr.vmem [resolvable:$true] %s530
      %533 = dma.vmem_to_hbm [thread:$0]  %s531, 384, %s4, [#allocation5]
    $region21: #{bbox_head_forward.1} parent=1 // pred_fallthru
      _
    // Predicated region
    $region22: #{bbox_head_forward.1} parent=1 // pred_check
      _
    $region23: #{bbox_head_forward.1} parent=1 // pred_check_branch
      %535 = sbr.rel (0) target = $region25
    $region24: #{bbox_head_forward.1} parent=1 // pred_region
      %536 = dma.done [#allocation3], 128
    $region25: #{bbox_head_forward.1} parent=1 // pred_fallthru
      _
    // Predicated region
    $region26: #{bbox_head_forward.1} parent=1 // pred_check
      _
    $region27: #{bbox_head_forward.1} parent=1 // pred_check_branch
      %538 = sbr.rel (0) target = $region29
    $region28: #{bbox_head_forward.1} parent=1 // pred_region
      %539 = dma.done [#allocation5], 384
    $region29: #{bbox_head_forward.1} parent=1 // pred_fallthru
      _
    %540 = vsyncpa [#allocation3], 1
    %541 = vsyncpa [#allocation5], 1

</llo_original>
